<compile_context>
chip_gen: v7x
topology: tpu7x:2x2x1
jax: 0.10.0
libtpu: 0.0.40
codegen_flags: <defaults>
</compile_context>

<pallas_src>
import functools
import math

import jax
import jax.numpy as jnp
from jax.experimental import pallas as pl
from jax.experimental.pallas import tpu as pltpu

_LANE = 128
_SUBLANE = 8
_NEG_BIG = -1e30                      # bias for padded class lanes (E > 1)
_CLAMP_LOG = math.log(1e-40)          # torch.clamp(., min=1e-40) in log space


def _round_up(v, m):
    return (v + m - 1) // m * m


def _ensemble_max_kernel(x_ref, w_ref, b_ref, o_ref, acc_ref, *,
                         num_models, c_pad, clamp_log):
    """One batch tile, one K tile.

    x_ref : (bm, tk)        batch x contraction tile
    w_ref : (tk, E*c_pad)   all member weights, ensemble flattened on lanes
    b_ref : (1,  E*c_pad)   biases (padded lanes hold -1e30)
    o_ref : (bm, c_pad)     max(log_softmax) clamped at log(1e-40)
    acc_ref:(bm, E*c_pad)   f32 logits accumulator (persists across K steps)
    """
    k = pl.program_id(1)

    @pl.when(k == 0)
    def _():
        acc_ref[...] = jnp.zeros_like(acc_ref)

    acc_ref[...] += jnp.dot(x_ref[...].astype(w_ref.dtype), w_ref[...],
                            preferred_element_type=jnp.float32)

    @pl.when(k == pl.num_programs(1) - 1)
    def _():
        logits = acc_ref[...] + b_ref[...]
        out = None
        for e in range(num_models):       # static unroll; 128-lane aligned slices
            lg = logits[:, e * c_pad:(e + 1) * c_pad]
            m = jnp.max(lg, axis=-1, keepdims=True)
            s = jnp.sum(jnp.exp(lg - m), axis=-1, keepdims=True)
            ls = lg - (m + jnp.log(s))    # log-softmax; only a (bm,1) log per member
            out = ls if out is None else jnp.maximum(out, ls)
        # log(clamp(max_e softmax_e, 1e-40)) == max(max_e log_softmax_e, log(1e-40))
        o_ref[...] = jnp.maximum(out, clamp_log)


def _single_model_kernel(x_ref, w_ref, b_ref, o_ref, acc_ref):
    """len(models) == 1 path: raw model output, no softmax / clamp / log."""
    k = pl.program_id(1)

    @pl.when(k == 0)
    def _():
        acc_ref[...] = jnp.zeros_like(acc_ref)

    acc_ref[...] += jnp.dot(x_ref[...].astype(w_ref.dtype), w_ref[...],
                            preferred_element_type=jnp.float32)

    @pl.when(k == pl.num_programs(1) - 1)
    def _():
        o_ref[...] = acc_ref[...] + b_ref[...]


def make_ensemble_max(w_stack, b_stack, dot_dtype=jnp.float32):
    """One-time weight prep + jitted fused forward.

    w_stack: (E, D, C) f32, b_stack: (E, 1, C) f32.
    Returns forward(x: (B, D) f32) -> (B, C) f32.
    For large D pass dot_dtype=jnp.bfloat16 (halves weight HBM/VMEM, softmax stays f32).
    """
    w_stack = jnp.asarray(w_stack, jnp.float32)
    E, D, C = w_stack.shape
    assert E > 0
    b_stack = jnp.asarray(b_stack, jnp.float32).reshape(E, 1, C)

    c_pad = _round_up(C, _LANE)               # per-member lane width (>= 128)
    n = E * c_pad
    w_bytes = jnp.dtype(dot_dtype).itemsize

    # K (contraction) tiling: keep the (possibly double-buffered) weight tile
    # under ~16 MiB so large-D configs still fit v7x's 64 MiB VMEM.
    budget = 16 << 20
    if 2 * D * n * w_bytes > budget:
        tk = max(_LANE, (budget // (2 * n * w_bytes)) // _LANE * _LANE)
    else:
        tk = D
    d_pad = _round_up(D, tk)
    num_k = d_pad // tk

    # ---- one-time re-layout (hoisted out of the per-call forward) ----------
    # Padded class lanes get a huge negative bias so they vanish under each
    # member's softmax; weight columns / extra D rows are zero-padded.
    pad_bias = _NEG_BIG if E > 1 else 0.0
    w_p = jnp.pad(w_stack, ((0, 0), (0, d_pad - D), (0, c_pad - C)))
    b_p = jnp.pad(b_stack, ((0, 0), (0, 0), (0, c_pad - C)),
                  constant_values=pad_bias)
    w_flat = jnp.transpose(w_p, (1, 0, 2)).reshape(d_pad, n).astype(dot_dtype)
    b_flat = b_p.reshape(1, n)
    w_flat = jax.device_put(w_flat)
    b_flat = jax.device_put(b_flat)

    if E > 1:
        kernel = functools.partial(_ensemble_max_kernel, num_models=E,
                                   c_pad=c_pad, clamp_log=_CLAMP_LOG)
    else:
        kernel = _single_model_kernel

    def _forward(w_flat, b_flat, x):
        B = x.shape[0]
        assert x.shape[1] == D

        # Batch tile: large enough to amortize grid overhead, chosen to minimize
        # padding waste; split a single-tile grid so both v7x TCs get work
        # (near-free on 1-TC v5e/v6e: one extra ~0.35us grid step).
        bm = min(256, _round_up(B, _SUBLANE))
        for cand in (256, 192, 128):
            if cand <= bm and (_round_up(B, cand) - B) < (_round_up(B, bm) - B):
                bm = cand
        if _round_up(B, bm) == bm and bm >= 2 * _SUBLANE:
            bm = _round_up((bm + 1) // 2, _SUBLANE)
        b_pad = _round_up(B, bm)

        x_p = x
        if b_pad != B or d_pad != D:
            x_p = jnp.pad(x, ((0, b_pad - B), (0, d_pad - D)))

        # Explicit VMEM budget: x tiles (2x) + weight tile(s) + bias + out tiles (2x)
        # + logits accumulator scratch + headroom for in-kernel temporaries.
        w_bufs = 1 if num_k == 1 else 2
        est = (2 * bm * tk * 4 + w_bufs * tk * n * w_bytes + n * 4
               + 2 * bm * c_pad * 4 + bm * n * 4 + 2 * bm * n * 4)
        vmem_limit = int(min(max(est * 5 // 4, 32 << 20), 64 << 20))

        if num_k == 1:
            # Invariant weight block: no point double-buffering it.
            w_spec = pl.BlockSpec((tk, n), lambda i, k: (0, 0),
                                  pipeline_mode=pl.Buffered(1))
        else:
            w_spec = pl.BlockSpec((tk, n), lambda i, k: (k, 0))
        b_spec = pl.BlockSpec((1, n), lambda i, k: (0, 0),
                              pipeline_mode=pl.Buffered(1))

        out_padded = pl.pallas_call(
            kernel,
            out_shape=jax.ShapeDtypeStruct((b_pad, c_pad), jnp.float32),
            grid=(b_pad // bm, num_k),
            in_specs=[
                pl.BlockSpec((bm, tk), lambda i, k: (i, k)),   # batch x K tile
                w_spec,                                        # all member weights
                b_spec,                                        # all member biases
            ],
            out_specs=pl.BlockSpec((bm, c_pad), lambda i, k: (i, 0)),  # lane-dense
            scratch_shapes=[pltpu.VMEM((bm, n), jnp.float32)],         # logits acc
            compiler_params=pltpu.CompilerParams(
                dimension_semantics=("parallel", "arbitrary"),
                vmem_limit_bytes=vmem_limit,
            ),
        )(x_p, w_flat, b_flat)

        return out_padded[:B, :C]

    fwd = jax.jit(_forward)
    return lambda x: fwd(w_flat, b_flat, x)


def _reference(x, w_stack, b_stack):
    """Pure-JAX reference mirroring the PyTorch forward."""
    E = w_stack.shape[0]
    logits0 = x @ w_stack[0] + b_stack[0, 0]
    if E == 1:
        return logits0
    out = jax.nn.softmax(logits0, axis=-1)
    for i in range(1, E):
        out = jnp.maximum(
            out, jax.nn.softmax(x @ w_stack[i] + b_stack[i, 0], axis=-1))
    return jnp.log(jnp.clip(out, 1e-40, None))


if __name__ == "__main__":
    # Small, deterministic shapes.
    E, B, D, C = 3, 8, 32, 16

    key = jax.random.PRNGKey(0)
    kx, kw, kb = jax.random.split(key, 3)
    x = jax.random.normal(kx, (B, D), dtype=jnp.float32)
    w_stack = 0.1 * jax.random.normal(kw, (E, D, C), dtype=jnp.float32)
    b_stack = 0.1 * jax.random.normal(kb, (E, 1, C), dtype=jnp.float32)

    # Ensemble path (E > 1): softmax -> max -> clamp -> log.
    fwd = make_ensemble_max(w_stack, b_stack)
    out = jax.block_until_ready(fwd(x))
    ref = _reference(x, w_stack, b_stack)
    assert out.shape == (B, C)
    assert jnp.allclose(out, ref, atol=1e-3, rtol=1e-3), "ensemble mismatch vs reference"

    # Single-model path (E == 1): raw model output.
    fwd1 = make_ensemble_max(w_stack[:1], b_stack[:1])
    out1 = jax.block_until_ready(fwd1(x))
    ref1 = _reference(x, w_stack[:1], b_stack[:1])
    assert out1.shape == (B, C)
    assert jnp.allclose(out1, ref1, atol=1e-4, rtol=1e-4), "single-model mismatch"

    print("KERNEL_OK")
</pallas_src>

<mosaic_0001>
module attributes {stable_mosaic.version = 11 : i64} {
  func.func @_ensemble_max_kernel(%arg0: i32, %arg1: i32, %arg2: memref<8x32xf32, #tpu.memory_space<vmem>>, %arg3: memref<32x384xf32, #tpu.memory_space<vmem>>, %arg4: memref<1x384xf32, #tpu.memory_space<vmem>>, %arg5: memref<8x128xf32, #tpu.memory_space<vmem>>, %arg6: memref<8x384xf32, #tpu.memory_space<vmem>>) attributes {dimension_semantics = [#tpu.dimension_semantics<parallel>, #tpu.dimension_semantics<arbitrary>], iteration_bounds = array<i64: 1, 1>, scalar_prefetch = 0 : i64, scratch_operands = 1 : i64, tpu.core_type = #tpu.core_type<tc>, window_params = [{transform_indices = @transform_0, window_bounds = array<i64: 8, 32>}, {pipeline_mode = #tpu.pipeline_mode<synchronous>, transform_indices = @transform_1, window_bounds = array<i64: 32, 384>}, {pipeline_mode = #tpu.pipeline_mode<synchronous>, transform_indices = @transform_2, window_bounds = array<i64: 1, 384>}, {transform_indices = @transform_3, window_bounds = array<i64: 8, 128>}]} {
    %c0_i32 = arith.constant 0 : i32
    %0 = arith.cmpi eq, %arg1, %c0_i32 : i32
    %1 = arith.extui %0 : i1 to i32
    %c0_i32_0 = arith.constant 0 : i32
    %2 = arith.cmpi ne, %1, %c0_i32_0 : i32
    scf.if %2 {
      %cst_10 = arith.constant 0.000000e+00 : f32
      %12 = vector.broadcast %cst_10 : f32 to vector<8x384xf32>
      %c0_11 = arith.constant 0 : index
      %c0_12 = arith.constant 0 : index
      %13 = vector.load %arg6[%c0_11, %c0_12] : memref<8x384xf32, #tpu.memory_space<vmem>>, vector<8x384xf32>
      tpu.vector_store %arg6[%c0_11, %c0_12], %12 {strides = array<i32>} : memref<8x384xf32, #tpu.memory_space<vmem>>, vector<8x384xf32>,
    } else {
    }
    %c0 = arith.constant 0 : index
    %c0_1 = arith.constant 0 : index
    %3 = vector.load %arg6[%c0, %c0_1] : memref<8x384xf32, #tpu.memory_space<vmem>>, vector<8x384xf32>
    %c0_2 = arith.constant 0 : index
    %c0_3 = arith.constant 0 : index
    %4 = vector.load %arg2[%c0_2, %c0_3] : memref<8x32xf32, #tpu.memory_space<vmem>>, vector<8x32xf32>
    %c0_4 = arith.constant 0 : index
    %c0_5 = arith.constant 0 : index
    %5 = vector.load %arg3[%c0_4, %c0_5] : memref<32x384xf32, #tpu.memory_space<vmem>>, vector<32x384xf32>
    %cst = arith.constant dense<0.000000e+00> : vector<8x384xf32>
    %6 = tpu.matmul %4, %5, %cst {dimension_numbers = #tpu.dot_dimension_numbers<[1], [0], [0], [1], [0, 0, 1, 1], [], []>} : vector<8x32xf32>, vector<32x384xf32>, vector<8x384xf32> -> vector<8x384xf32>
    %7 = arith.addf %3, %6 : vector<8x384xf32>
    %c0_6 = arith.constant 0 : index
    %c0_7 = arith.constant 0 : index
    %8 = vector.load %arg6[%c0_6, %c0_7] : memref<8x384xf32, #tpu.memory_space<vmem>>, vector<8x384xf32>
    tpu.vector_store %arg6[%c0_6, %c0_7], %7 {strides = array<i32>} : memref<8x384xf32, #tpu.memory_space<vmem>>, vector<8x384xf32>,
    %c0_i32_8 = arith.constant 0 : i32
    %9 = arith.cmpi eq, %arg1, %c0_i32_8 : i32
    %10 = arith.extui %9 : i1 to i32
    %c0_i32_9 = arith.constant 0 : i32
    %11 = arith.cmpi ne, %10, %c0_i32_9 : i32
    scf.if %11 {
      %c0_10 = arith.constant 0 : index
      %c0_11 = arith.constant 0 : index
      %12 = vector.load %arg6[%c0_10, %c0_11] : memref<8x384xf32, #tpu.memory_space<vmem>>, vector<8x384xf32>
      %c0_12 = arith.constant 0 : index
      %c0_13 = arith.constant 0 : index
      %13 = vector.load %arg4[%c0_12, %c0_13] : memref<1x384xf32, #tpu.memory_space<vmem>>, vector<1x384xf32>
      %14 = vector.broadcast %13 : vector<1x384xf32> to vector<8x384xf32>
      %15 = arith.addf %12, %14 : vector<8x384xf32>
      %16 = vector.extract_strided_slice %15 {offsets = [0, 0], sizes = [8, 128], strides = [1, 1]} : vector<8x384xf32> to vector<8x128xf32>
      %cst_14 = arith.constant dense<0xFF800000> : vector<8xf32>
      %17 = vector.multi_reduction <maximumf>, %16, %cst_14 [1] : vector<8x128xf32> to vector<8xf32>
      %18 = vector.shape_cast %17 : vector<8xf32> to vector<8x1xf32>
      %19 = vector.broadcast %18 : vector<8x1xf32> to vector<8x128xf32>
      %20 = arith.subf %16, %19 : vector<8x128xf32>
      %21 = math.exp %20 : vector<8x128xf32>
      %cst_15 = arith.constant dense<0.000000e+00> : vector<8xf32>
      %22 = vector.multi_reduction <add>, %21, %cst_15 [1] : vector<8x128xf32> to vector<8xf32>
      %23 = vector.shape_cast %22 : vector<8xf32> to vector<8x1xf32>
      %24 = math.log %23 : vector<8x1xf32>
      %25 = arith.addf %18, %24 : vector<8x1xf32>
      %26 = vector.broadcast %25 : vector<8x1xf32> to vector<8x128xf32>
      %27 = arith.subf %16, %26 : vector<8x128xf32>
      %28 = vector.extract_strided_slice %15 {offsets = [0, 128], sizes = [8, 128], strides = [1, 1]} : vector<8x384xf32> to vector<8x128xf32>
      %cst_16 = arith.constant dense<0xFF800000> : vector<8xf32>
      %29 = vector.multi_reduction <maximumf>, %28, %cst_16 [1] : vector<8x128xf32> to vector<8xf32>
      %30 = vector.shape_cast %29 : vector<8xf32> to vector<8x1xf32>
      %31 = vector.broadcast %30 : vector<8x1xf32> to vector<8x128xf32>
      %32 = arith.subf %28, %31 : vector<8x128xf32>
      %33 = math.exp %32 : vector<8x128xf32>
      %cst_17 = arith.constant dense<0.000000e+00> : vector<8xf32>
      %34 = vector.multi_reduction <add>, %33, %cst_17 [1] : vector<8x128xf32> to vector<8xf32>
      %35 = vector.shape_cast %34 : vector<8xf32> to vector<8x1xf32>
      %36 = math.log %35 : vector<8x1xf32>
      %37 = arith.addf %30, %36 : vector<8x1xf32>
      %38 = vector.broadcast %37 : vector<8x1xf32> to vector<8x128xf32>
      %39 = arith.subf %28, %38 : vector<8x128xf32>
      %40 = arith.maximumf %27, %39 : vector<8x128xf32>
      %41 = vector.extract_strided_slice %15 {offsets = [0, 256], sizes = [8, 128], strides = [1, 1]} : vector<8x384xf32> to vector<8x128xf32>
      %cst_18 = arith.constant dense<0xFF800000> : vector<8xf32>
      %42 = vector.multi_reduction <maximumf>, %41, %cst_18 [1] : vector<8x128xf32> to vector<8xf32>
      %43 = vector.shape_cast %42 : vector<8xf32> to vector<8x1xf32>
      %44 = vector.broadcast %43 : vector<8x1xf32> to vector<8x128xf32>
      %45 = arith.subf %41, %44 : vector<8x128xf32>
      %46 = math.exp %45 : vector<8x128xf32>
      %cst_19 = arith.constant dense<0.000000e+00> : vector<8xf32>
      %47 = vector.multi_reduction <add>, %46, %cst_19 [1] : vector<8x128xf32> to vector<8xf32>
      %48 = vector.shape_cast %47 : vector<8xf32> to vector<8x1xf32>
      %49 = math.log %48 : vector<8x1xf32>
      %50 = arith.addf %43, %49 : vector<8x1xf32>
      %51 = vector.broadcast %50 : vector<8x1xf32> to vector<8x128xf32>
      %52 = arith.subf %41, %51 : vector<8x128xf32>
      %53 = arith.maximumf %40, %52 : vector<8x128xf32>
      %cst_20 = arith.constant -9.210340e+01 : f32
      %54 = vector.broadcast %cst_20 : f32 to vector<8x128xf32>
      %55 = arith.maximumf %53, %54 : vector<8x128xf32>
      %c0_21 = arith.constant 0 : index
      %c0_22 = arith.constant 0 : index
      %56 = vector.load %arg5[%c0_21, %c0_22] : memref<8x128xf32, #tpu.memory_space<vmem>>, vector<8x128xf32>
      tpu.vector_store %arg5[%c0_21, %c0_22], %55 {strides = array<i32>} : memref<8x128xf32, #tpu.memory_space<vmem>>, vector<8x128xf32>,
    } else {
    }
    return
  }
  func.func @transform_0(%arg0: i32, %arg1: i32) -> (i32, i32) {
    %c0_i32 = arith.constant 0 : i32
    return %arg0, %arg1 : i32, i32
  }
  func.func @transform_1(%arg0: i32, %arg1: i32) -> (i32, i32) {
    %c0_i32 = arith.constant 0 : i32
    %c0_i32_0 = arith.constant 0 : i32
    %c0_i32_1 = arith.constant 0 : i32
    return %c0_i32, %c0_i32_0 : i32, i32
  }
  func.func @transform_2(%arg0: i32, %arg1: i32) -> (i32, i32) {
    %c0_i32 = arith.constant 0 : i32
    %c0_i32_0 = arith.constant 0 : i32
    %c0_i32_1 = arith.constant 0 : i32
    return %c0_i32, %c0_i32_0 : i32, i32
  }
  func.func @transform_3(%arg0: i32, %arg1: i32) -> (i32, i32) {
    %c0_i32 = arith.constant 0 : i32
    %c0_i32_0 = arith.constant 0 : i32
    return %arg0, %c0_i32 : i32, i32
  }
}

</mosaic_0001>

<llo_original>
// kernel: _forward.1
$region0: #{_forward.1}
  #allocation0 [shape = 'u32[]', space=smem, size = 0x4, offset = 0x4, fixed_abs, tag = 'smem constant byte address 0x4 - core index']
  #allocation1 [shape = 'u32[144,128]{1,0:T(1,128)}', space=vmem, size = 0x12000, scoped, tag = 'internal scratch']
  #allocation2 [shape = 'f32[8,384]{1,0:T(8,128)}', space=vmem, size = 0x3000, scoped, tag = 'scratch operand']
  %s0 = inlined_call_operand.hbm [shape: f32[8,32], index: 0, kind: input, shape index: {}]
  %s1 = inlined_call_operand.hbm [shape: f32[32,384], index: 1, kind: input, shape index: {}]
  %s2 = inlined_call_operand.vmem [shape: f32[1,384], index: 2, kind: input, shape index: {}]
  %s3 = inlined_call_operand.hbm [shape: f32[8,128], index: 3, kind: output, shape index: {}]
  %s4 = sld [smem:[#allocation0]]
  $region38: #{_forward.1} parent=0
    _
  %s6 = ssub.s32 1, %s4
  %s7 = scalar_select 0, %s6, %s4
  $region1: #{_forward.1} parent=0
    #allocation3 [shape = 'u8[4096]{0}', space=vmem, size = 0x1000, scoped, tag = 'input window, operand 0, single buffered']
    #allocation4 [shape = 's32[1]{0}', space=sflag, size = 0x4, scoped, tag = 'scoped memory for _forward.1']
    #allocation5 [shape = 's32[1]{0}', space=sflag, size = 0x4, scoped, tag = 'scoped memory for _forward.1']
    #allocation6 [shape = 'u8[49152]{0}', space=vmem, size = 0xc000, scoped, tag = 'input window, operand 1, single buffered']
    #allocation7 [shape = 's32[1]{0}', space=sflag, size = 0x4, scoped, tag = 'scoped memory for _forward.1']
    #allocation8 [shape = 'u8[4096]{0}', space=vmem, size = 0x1000, scoped, tag = 'output window, operand 0, single buffered']
    %8 = vsyncpa [#allocation4], 0
    %9 = vsyncpa [#allocation7], 0
    %10 = vsyncpa [#allocation5], 0
    // Predicated region
    $region2: #{_forward.1} parent=1 // pred_check
      _
    $region3: #{_forward.1} parent=1 // pred_check_branch
      %12 = sbr.rel (0) target = $region5
    $region4: #{_forward.1} parent=1 // pred_region
      %s14 = ssub.s32 128, 128
      %15 = vsyncadd [#allocation4], %s14
      %s17 = sshll.u32 [#allocation3], 4
      %s18 = int_to_ptr.vmem [resolvable:$true] %s17
      %20 = dma.hbm_to_vmem [thread:$0]  %s0, 128, %s18, [#allocation4]
    $region5: #{_forward.1} parent=1 // pred_fallthru
      _
    // Predicated region
    $region6: #{_forward.1} parent=1 // pred_check
      _
    $region7: #{_forward.1} parent=1 // pred_check_branch
      %22 = sbr.rel (0) target = $region9
    $region8: #{_forward.1} parent=1 // pred_region
      %s24 = ssub.s32 1536, 1536
      %25 = vsyncadd [#allocation7], %s24
      %s26 = sshll.u32 [#allocation6], 4
      %s27 = int_to_ptr.vmem [resolvable:$true] %s26
      %32 = dma.hbm_to_vmem [thread:$0]  %s1, 1536, %s27, [#allocation7], 384, 384, 24
    $region9: #{_forward.1} parent=1 // pred_fallthru
      _
    // Predicated region
    $region10: #{_forward.1} parent=1 // pred_check
      _
    $region11: #{_forward.1} parent=1 // pred_check_branch
      %34 = sbr.rel (0) target = $region13
    $region12: #{_forward.1} parent=1 // pred_region
      _
    $region13: #{_forward.1} parent=1 // pred_fallthru
      _
    // Predicated region
    $region14: #{_forward.1} parent=1 // pred_check
      _
    $region15: #{_forward.1} parent=1 // pred_check_branch
      %36 = sbr.rel (0) target = $region17
    $region16: #{_forward.1} parent=1 // pred_region
      %37 = dma.done [#allocation4], 128
    $region17: #{_forward.1} parent=1 // pred_fallthru
      _
    // Predicated region
    $region18: #{_forward.1} parent=1 // pred_check
      _
    $region19: #{_forward.1} parent=1 // pred_check_branch
      %39 = sbr.rel (0) target = $region21
    $region20: #{_forward.1} parent=1 // pred_region
      %40 = dma.done [#allocation7], 1536
    $region21: #{_forward.1} parent=1 // pred_fallthru
      _
    %p41 = scmp.eq.s32.totalorder 0, 0
    // Predicated region
    $region22: #{_forward.1} parent=1 // pred_check
      %p42 = pneg %p41
    $region23: #{_forward.1} parent=1 // pred_check_branch
      %44 = sbr.rel (%p42) target = $region25
    $region24: #{_forward.1} parent=1 // pred_region
      %45 = vst [vmem:[#allocation2] sm:$0xff] 0.0
      %46 = vst [vmem:[#allocation2 + $0x8] sm:$0xff] 0.0
      %47 = vst [vmem:[#allocation2 + $0x10] sm:$0xff] 0.0
    $region25: #{_forward.1} parent=1 // pred_fallthru
      _
    %v48 = vld [vmem:[#allocation2] sm:$0xff]
    %v49 = vld [vmem:[#allocation2 + $0x8] sm:$0xff]
    %v50 = vld [vmem:[#allocation2 + $0x10] sm:$0xff]
    %v51 = vld [vmem:[#allocation3] sm:$0xff]
    %v52 = vld [vmem:[#allocation6] sm:$0xff]
    %v53 = vld [vmem:[#allocation6 + $0x8] sm:$0xff]
    %v54 = vld [vmem:[#allocation6 + $0x10] sm:$0xff]
    %v55 = vld [vmem:[#allocation6 + $0x18] sm:$0xff]
    %v56 = vld [vmem:[#allocation6 + $0x20] sm:$0xff]
    %v57 = vld [vmem:[#allocation6 + $0x28] sm:$0xff]
    %v58 = vld [vmem:[#allocation6 + $0x30] sm:$0xff]
    %v59 = vld [vmem:[#allocation6 + $0x38] sm:$0xff]
    %v60 = vld [vmem:[#allocation6 + $0x40] sm:$0xff]
    %v61 = vld [vmem:[#allocation6 + $0x48] sm:$0xff]
    %v62 = vld [vmem:[#allocation6 + $0x50] sm:$0xff]
    %v63 = vld [vmem:[#allocation6 + $0x58] sm:$0xff]
    %vm64 = vcmask 261120
    %v66 = vsel %vm64, %v51, 0
    %68 = vmatprep.subr.mxu0 %v53
    %69 = vmatpush1.msra.mxu0 %v52
    %70 = vmatprep.subr.mxu0 %v56
    %71 = vmatpush1.msra.mxu0 %v55
    %72 = vmatprep.subr.mxu0 %v59
    %73 = vmatpush1.msra.mxu0 %v58
    %74 = vmatprep.subr.mxu0 %v62
    %75 = vmatpush1.msra.mxu0 %v61
    %76 = vmatprep.subr.mxu0 0.0
    %77 = vmatpush1.msra.mxu0 0.0
    %78 = vmatprep.subr.mxu0 0.0
    %79 = vmatpush1.msra.mxu0 0.0
    %80 = vmatprep.subr.mxu0 0.0
    %81 = vmatpush1.msra.mxu0 0.0
    %82 = vmatprep.subr.mxu0 0.0
    %83 = vmatpush1.msra.mxu0 0.0
    %84 = vmatprep.subr.mxu0 0.0
    %85 = vmatpush1.msra.mxu0 0.0
    %86 = vmatprep.subr.mxu0 0.0
    %87 = vmatpush1.msra.mxu0 0.0
    %88 = vmatprep.subr.mxu0 0.0
    %89 = vmatpush1.msra.mxu0 0.0
    %90 = vmatprep.subr.mxu0 0.0
    %91 = vmatpush1.msra.mxu0 0.0
    %92 = vmatprep.subr.mxu0 0.0
    %93 = vmatpush1.msra.mxu0 0.0
    %94 = vmatprep.subr.mxu0 0.0
    %95 = vmatpush1.msra.mxu0 0.0
    %96 = vmatprep.subr.mxu0 0.0
    %97 = vmatpush1.msra.mxu0 0.0
    %98 = vmatprep.subr.mxu0 0.0
    %99 = vmatpush1.msra.mxu0 0.0
    %100 = vmatprep.subr.mxu0 0.0
    %101 = vmatpush1.msra.mxu0 0.0
    %102 = vmatprep.subr.mxu0 0.0
    %103 = vmatpush1.msra.mxu0 0.0
    %104 = vmatprep.subr.mxu0 0.0
    %105 = vmatpush1.msra.mxu0 0.0
    %106 = vmatprep.subr.mxu0 0.0
    %107 = vmatpush1.msra.mxu0 0.0
    %108 = vmatprep.subr.mxu0 0.0
    %109 = vmatpush1.msra.mxu0 0.0
    %110 = vmatprep.subr.mxu0 0.0
    %111 = vmatpush1.msra.mxu0 0.0
    %112 = vmatprep.subr.mxu0 0.0
    %113 = vmatpush1.msra.mxu0 0.0
    %114 = vmatprep.subr.mxu0 0.0
    %115 = vmatpush1.msra.mxu0 0.0
    %116 = vmatprep.subr.mxu0 0.0
    %117 = vmatpush1.msra.mxu0 0.0
    %118 = vmatprep.subr.mxu0 0.0
    %119 = vmatpush1.msra.mxu0 0.0
    %120 = vmatprep.subr.mxu0 0.0
    %121 = vmatpush1.msra.mxu0 0.0
    %122 = vmatprep.subr.mxu0 0.0
    %123 = vmatpush1.msra.mxu0 0.0
    %124 = vmatprep.subr.mxu0 0.0
    %125 = vmatpush1.msra.mxu0 0.0
    %126 = vmatprep.subr.mxu0 0.0
    %127 = vmatpush1.msra.mxu0 0.0
    %128 = vmatprep.subr.mxu0 0.0
    %129 = vmatpush1.msra.mxu0 0.0
    %130 = vmatprep.subr.mxu0 0.0
    %131 = vmatpush1.msra.mxu0 0.0
    %132 = vmatprep.mubr.f32.mxu0 0.0
    %133 = vmatmul.mubr.f32.gmra.mrb[0].mxu0 %v66
    %v134 = vpop.f32.mrb[0].mxu0
    %v135 = vadd.f32 0.0, %v134
    %v136 = vpop.f32.mrb[0].mxu0
    %v137 = vadd.f32 0.0, %v136
    %138 = vdwg.mxu0
    %139 = vmatprep.subr.mxu0 0.0
    %140 = vmatpush1.msra.mxu0 %v54
    %141 = vmatprep.subr.mxu0 0.0
    %142 = vmatpush1.msra.mxu0 %v57
    %143 = vmatprep.subr.mxu0 0.0
    %144 = vmatpush1.msra.mxu0 %v60
    %145 = vmatprep.subr.mxu0 0.0
    %146 = vmatpush1.msra.mxu0 %v63
    %147 = vmatprep.subr.mxu0 0.0
    %148 = vmatpush1.msra.mxu0 0.0
    %149 = vmatprep.subr.mxu0 0.0
    %150 = vmatpush1.msra.mxu0 0.0
    %151 = vmatprep.subr.mxu0 0.0
    %152 = vmatpush1.msra.mxu0 0.0
    %153 = vmatprep.subr.mxu0 0.0
    %154 = vmatpush1.msra.mxu0 0.0
    %155 = vmatprep.subr.mxu0 0.0
    %156 = vmatpush1.msra.mxu0 0.0
    %157 = vmatprep.subr.mxu0 0.0
    %158 = vmatpush1.msra.mxu0 0.0
    %159 = vmatprep.subr.mxu0 0.0
    %160 = vmatpush1.msra.mxu0 0.0
    %161 = vmatprep.subr.mxu0 0.0
    %162 = vmatpush1.msra.mxu0 0.0
    %163 = vmatprep.subr.mxu0 0.0
    %164 = vmatpush1.msra.mxu0 0.0
    %165 = vmatprep.subr.mxu0 0.0
    %166 = vmatpush1.msra.mxu0 0.0
    %167 = vmatprep.subr.mxu0 0.0
    %168 = vmatpush1.msra.mxu0 0.0
    %169 = vmatprep.subr.mxu0 0.0
    %170 = vmatpush1.msra.mxu0 0.0
    %171 = vmatprep.subr.mxu0 0.0
    %172 = vmatpush1.msra.mxu0 0.0
    %173 = vmatprep.subr.mxu0 0.0
    %174 = vmatpush1.msra.mxu0 0.0
    %175 = vmatprep.subr.mxu0 0.0
    %176 = vmatpush1.msra.mxu0 0.0
    %177 = vmatprep.subr.mxu0 0.0
    %178 = vmatpush1.msra.mxu0 0.0
    %179 = vmatprep.subr.mxu0 0.0
    %180 = vmatpush1.msra.mxu0 0.0
    %181 = vmatprep.subr.mxu0 0.0
    %182 = vmatpush1.msra.mxu0 0.0
    %183 = vmatprep.subr.mxu0 0.0
    %184 = vmatpush1.msra.mxu0 0.0
    %185 = vmatprep.subr.mxu0 0.0
    %186 = vmatpush1.msra.mxu0 0.0
    %187 = vmatprep.subr.mxu0 0.0
    %188 = vmatpush1.msra.mxu0 0.0
    %189 = vmatprep.subr.mxu0 0.0
    %190 = vmatpush1.msra.mxu0 0.0
    %191 = vmatprep.subr.mxu0 0.0
    %192 = vmatpush1.msra.mxu0 0.0
    %193 = vmatprep.subr.mxu0 0.0
    %194 = vmatpush1.msra.mxu0 0.0
    %195 = vmatprep.subr.mxu0 0.0
    %196 = vmatpush1.msra.mxu0 0.0
    %197 = vmatprep.subr.mxu0 0.0
    %198 = vmatpush1.msra.mxu0 0.0
    %199 = vmatprep.subr.mxu0 0.0
    %200 = vmatpush1.msra.mxu0 0.0
    %201 = vmatprep.subr.mxu0 0.0
    %202 = vmatpush1.msra.mxu0 0.0
    %203 = vmatprep.mubr.f32.mxu0 0.0
    %204 = vmatmul.mubr.f32.gmra.mrb[0].mxu0 %v66
    %v205 = vpop.f32.mrb[0].mxu0
    %v206 = vadd.f32 0.0, %v205
    %v207 = vpop.f32.mrb[0].mxu0
    %208 = vdwg.mxu0
    %v209 = vadd.f32 %v48, %v135
    %v210 = vadd.f32 %v49, %v137
    %v211 = vadd.f32 %v50, %v206
    %212 = vst [vmem:[#allocation2] sm:$0xff] %v209
    %213 = vst [vmem:[#allocation2 + $0x8] sm:$0xff] %v210
    %214 = vst [vmem:[#allocation2 + $0x10] sm:$0xff] %v211
    // Predicated region
    $region26: #{_forward.1} parent=1 // pred_check
      %p215 = pneg %p41
    $region27: #{_forward.1} parent=1 // pred_check_branch
      %217 = sbr.rel (%p215) target = $region29
    $region28: #{_forward.1} parent=1 // pred_region
      %v218 = vld [vmem:[#allocation2] sm:$0xff]
      %v219 = vld [vmem:[#allocation2 + $0x8] sm:$0xff]
      %v220 = vld [vmem:[#allocation2 + $0x10] sm:$0xff]
      %v221 = vld [vmem:[%s2] sm:$0x7]
      %v223 = vlaneseq
      %v224 = vshrl.u32 %v223, 7
      %v225 = vsub.s32 0, %v224
      %v226 = vrot.slane %v221, %v225
      %v227 = vlaneseq
      %v228 = vshrl.u32 %v227, 7
      %v229 = vsub.s32 1, %v228
      %v230 = vrot.slane %v221, %v229
      %v231 = vlaneseq
      %v232 = vshrl.u32 %v231, 7
      %v233 = vsub.s32 2, %v232
      %v234 = vrot.slane %v221, %v233
      %v238 = vadd.f32 %v218, %v226
      %v239 = vadd.f32 %v219, %v230
      %v240 = vadd.f32 %v220, %v234
      %241 = vmax.xlane.f32.xlu0 %v238
      %v242 = vpop.xlane.xlu0 %241
      %v243 = vsub.f32 %v238, %v242
      %v244 = vmul.f32 %v243, 1.442695
      %v245 = vpow.pop %v244
      %246 = vadd.xlane.f32.xlu0 %v245
      %v247 = vpop.xlane.xlu0 %246
      %v248 = vlog2.pop %v247
      %v249 = vmul.f32 %v248, 0.6931472
      %v250 = vadd.f32 %v242, %v249
      %v251 = vsub.f32 %v238, %v250
      %252 = vmax.xlane.f32.xlu0 %v239
      %v253 = vpop.xlane.xlu0 %252
      %v254 = vsub.f32 %v239, %v253
      %v255 = vmul.f32 %v254, 1.442695
      %v256 = vpow.pop %v255
      %257 = vadd.xlane.f32.xlu0 %v256
      %v258 = vpop.xlane.xlu0 %257
      %v259 = vlog2.pop %v258
      %v260 = vmul.f32 %v259, 0.6931472
      %v261 = vadd.f32 %v253, %v260
      %v262 = vsub.f32 %v239, %v261
      %v263 = vmax.f32 %v251, %v262
      %264 = vmax.xlane.f32.xlu0 %v240
      %v265 = vpop.xlane.xlu0 %264
      %v266 = vsub.f32 %v240, %v265
      %v267 = vmul.f32 %v266, 1.442695
      %v268 = vpow.pop %v267
      %269 = vadd.xlane.f32.xlu0 %v268
      %v270 = vpop.xlane.xlu0 %269
      %v271 = vlog2.pop %v270
      %v272 = vmul.f32 %v271, 0.6931472
      %v273 = vadd.f32 %v265, %v272
      %v274 = vsub.f32 %v240, %v273
      %v275 = vmax.f32 %v263, %v274
      %v276 = vmax.f32 %v275, -92.1034
      %277 = vst [vmem:[#allocation8] sm:$0xff] %v276
    $region29: #{_forward.1} parent=1 // pred_fallthru
      _
    // Predicated region
    $region30: #{_forward.1} parent=1 // pred_check
      _
    $region31: #{_forward.1} parent=1 // pred_check_branch
      %279 = sbr.rel (0) target = $region33
    $region32: #{_forward.1} parent=1 // pred_region
      %s281 = ssub.s32 128, 128
      %282 = vsyncadd [#allocation5], %s281
      %s284 = sshll.u32 [#allocation8], 4
      %s285 = int_to_ptr.vmem [resolvable:$true] %s284
      %287 = dma.vmem_to_hbm [thread:$0]  %s285, 128, %s3, [#allocation5]
    $region33: #{_forward.1} parent=1 // pred_fallthru
      _
    // Predicated region
    $region34: #{_forward.1} parent=1 // pred_check
      _
    $region35: #{_forward.1} parent=1 // pred_check_branch
      %289 = sbr.rel (0) target = $region37
    $region36: #{_forward.1} parent=1 // pred_region
      %290 = dma.done [#allocation5], 128
    $region37: #{_forward.1} parent=1 // pred_fallthru
      _
    %291 = vsyncpa [#allocation4], 1
    %292 = vsyncpa [#allocation7], 1
    %293 = vsyncpa [#allocation5], 1

</llo_original>
